<compile_context>
chip_gen: v7x
topology: tpu7x:2x2x1
jax: 0.10.0
libtpu: 0.0.40
codegen_flags: <defaults>
</compile_context>

<pallas_src>
import functools

import numpy as np

import jax
import jax.numpy as jnp
from jax import lax
from jax.experimental import pallas as pl
from jax.experimental.pallas import tpu as pltpu


def weighted_loss_kernel(key_row_ref, key_col_ref, logits_ref, y_ref,
                         wl_ref, w_ref, *, lamb, col_chunk):
    # key_row_ref: (1, TILE_N) int32  fused node keys, node index on lanes
    #              (padded lanes hold -1)
    # key_col_ref: (N_COL_PAD, 1) int32  same keys, node index on sublanes
    #              (padded rows hold -2, so they never match)
    # logits_ref:  (C, TILE_N) f32   transposed logits
    # y_ref:       (1, TILE_N) i32   labels
    # wl_ref:      (1, TILE_N) f32   out: node_loss * w
    # w_ref:       (1, TILE_N) f32   out: w
    tile_n = key_row_ref.shape[1]
    n_col = key_col_ref.shape[0]
    n_chunks = n_col // col_chunk            # static

    row_keys = key_row_ref[...]              # (1, TILE_N) int32
    ones_lhs = jnp.ones((8, col_chunk), dtype=jnp.float32)  # hoisted out of loop

    # ---- streaming key-count: count[i] = #{j : key_j == key_i} (incl. self) ----
    def body(c, acc):
        start = pl.multiple_of(c * col_chunk, col_chunk)
        col = key_col_ref[pl.ds(start, col_chunk), :]            # (CHUNK, 1)
        match = (col == row_keys).astype(jnp.float32)            # (CHUNK, TILE_N)
        # MXU reduction over the chunk (sublane) axis; all 8 result rows equal.
        return acc + jnp.dot(ones_lhs, match,
                             preferred_element_type=jnp.float32)

    acc = lax.fori_loop(0, n_chunks, body,
                        jnp.zeros((8, tile_n), dtype=jnp.float32))
    count = jnp.maximum(acc[0:1, :], 1.0)                        # (1, TILE_N)

    # w = count ** (-lamb)
    if lamb == 0.5:
        w = lax.rsqrt(count)                                     # single EUP op
    elif lamb == 1.0:
        w = pl.reciprocal(count)
    else:
        w = jnp.exp((-lamb) * jnp.log(count))
    w = jnp.where(row_keys >= 0, w, 0.0)                         # zero padded lanes

    # ---- per-node cross entropy: logsumexp(logits) - logits[y] ----
    logits = logits_ref[...]                                     # (C, TILE_N)
    m = jnp.max(logits, axis=0, keepdims=True)                   # (1, TILE_N)
    lse = m + jnp.log(jnp.sum(jnp.exp(logits - m), axis=0, keepdims=True))
    y = y_ref[...]                                               # (1, TILE_N)
    cls = lax.broadcasted_iota(jnp.int32, logits.shape, 0)       # (C, TILE_N)
    picked = jnp.sum(jnp.where(cls == y, logits, 0.0),
                     axis=0, keepdims=True)                      # (1, TILE_N)
    node_loss = lse - picked

    # ---- lane-dense per-node partial results ----
    w_ref[...] = w
    wl_ref[...] = node_loss * w


def weighted_loss_pallas(x, s0, s1, logits_nc, y, lamb, *,
                         tile_n=128, col_chunk=128):
    """x, s0, s1, y: (N,);  logits_nc: (N, C) (PyTorch `out` layout)."""
    n = int(x.shape[0])
    c = int(logits_nc.shape[1])

    # ---- exact, collision-free fused key (host-side glue, eager) ----------
    # The PyTorch module keys a dict on (x[i], s0[i], s1[i]). x is mapped to
    # its exact float-equality class id; s0/s1 are exact small integers, so
    # a single int32 key encodes the triple without collisions.
    # TODO(synk): the dict-based grouping itself has no Pallas equivalent; the
    # O(N^2) count that consumes the key is what runs in the kernel.
    x_np = np.asarray(x)
    _, x_id = np.unique(x_np, return_inverse=True)
    s0_np = np.rint(np.asarray(s0)).astype(np.int64)
    s1_np = np.rint(np.asarray(s1)).astype(np.int64)
    base = int(max(int(s0_np.max()), int(s1_np.max()))) + 1
    key = (x_id.astype(np.int64).reshape(-1) * base * base
           + s0_np * base + s1_np)
    assert int(key.max()) <= np.iinfo(np.int32).max, "fused key overflows int32"
    key = key.astype(np.int32)

    # ---- padding: lane axis to tile_n, column (sublane) axis to col_chunk --
    n_row_pad = ((n + tile_n - 1) // tile_n) * tile_n
    n_col_pad = ((n + col_chunk - 1) // col_chunk) * col_chunk

    key_row = np.full((1, n_row_pad), -1, dtype=np.int32)   # -1: padded lane
    key_row[0, :n] = key
    key_col = np.full((n_col_pad, 1), -2, dtype=np.int32)   # -2: never matches
    key_col[:n, 0] = key

    logits_cn = np.zeros((c, n_row_pad), dtype=np.float32)
    logits_cn[:, :n] = np.asarray(logits_nc, dtype=np.float32).T
    y_row = np.zeros((1, n_row_pad), dtype=np.int32)
    y_row[0, :n] = np.asarray(y, dtype=np.int32)

    kernel = functools.partial(weighted_loss_kernel,
                               lamb=float(lamb), col_chunk=int(col_chunk))

    wl, w = pl.pallas_call(
        kernel,
        out_shape=(jax.ShapeDtypeStruct((1, n_row_pad), jnp.float32),
                   jax.ShapeDtypeStruct((1, n_row_pad), jnp.float32)),
        grid=(n_row_pad // tile_n,),
        in_specs=[
            pl.BlockSpec((1, tile_n), lambda i: (0, i)),        # row keys
            pl.BlockSpec((n_col_pad, 1), lambda i: (0, 0)),     # column keys
            pl.BlockSpec((c, tile_n), lambda i: (0, i)),        # logits (C, N)
            pl.BlockSpec((1, tile_n), lambda i: (0, i)),        # labels
        ],
        out_specs=(pl.BlockSpec((1, tile_n), lambda i: (0, i)),
                   pl.BlockSpec((1, tile_n), lambda i: (0, i))),
        compiler_params=pltpu.CompilerParams(
            dimension_semantics=("parallel",)),
    )(jnp.asarray(key_row), jnp.asarray(key_col),
      jnp.asarray(logits_cn), jnp.asarray(y_row))

    # tiny epilogue in XLA (padded lanes contribute exactly 0)
    return jnp.sum(wl) / jnp.sum(w)


def reference_loss(x, s0, s1, logits_nc, y, lamb):
    """Pure-JAX reference mirroring the PyTorch module."""
    keys = jnp.stack([x, s0, s1], axis=1)                          # (N, 3)
    eq = jnp.all(keys[:, None, :] == keys[None, :, :], axis=-1)    # (N, N)
    count = eq.sum(axis=1).astype(jnp.float32)
    w = count ** (-lamb)
    lse = jax.nn.logsumexp(logits_nc, axis=1)
    picked = jnp.take_along_axis(logits_nc, y[:, None], axis=1)[:, 0]
    node_loss = lse - picked
    return jnp.sum(node_loss * w) / jnp.sum(w)


if __name__ == "__main__":
    N, C, E = 128, 2, 512          # small shapes (module hardcodes 1000 nodes)
    lamb = 0.5

    key = jax.random.PRNGKey(0)
    k1, k2, k3, k4 = jax.random.split(key, 4)
    x = (jax.random.uniform(k1, (N,)) > 0.5).astype(jnp.float32)   # data.x (binary node feat)
    edge_index = jax.random.randint(k2, (2, E), 0, N)              # self.edge_index
    y = jax.random.randint(k3, (N,), 0, C)                         # data.y
    out_logits = jax.random.normal(k4, (N, C), dtype=jnp.float32)  # `out` logits

    # ---- glue: per-edge scatter-add (the python edge loop in the module) ----
    row, col = edge_index[0], edge_index[1]
    is_one = (x[col] > 0.999).astype(jnp.float32)
    s0 = jax.ops.segment_sum(is_one, row, num_segments=N)          # x_Ni_state[:, 0]
    s1 = jax.ops.segment_sum(1.0 - is_one, row, num_segments=N)    # x_Ni_state[:, 1]

    loss = weighted_loss_pallas(x, s0, s1, out_logits, y, lamb)
    loss = jax.block_until_ready(loss)

    ref = reference_loss(x, s0, s1, out_logits, y, lamb)
    # w is f32 here vs float64 in PyTorch -> rtol 1e-3 is the documented slack.
    assert jnp.allclose(loss, ref, rtol=1e-3, atol=1e-5), (loss, ref)
    print("KERNEL_OK")
</pallas_src>

<mosaic_0001>
module attributes {stable_mosaic.version = 11 : i64} {
  func.func @weighted_loss_kernel(%arg0: i32, %arg1: memref<1x128xi32, #tpu.memory_space<vmem>>, %arg2: memref<128x1xi32, #tpu.memory_space<vmem>>, %arg3: memref<2x128xf32, #tpu.memory_space<vmem>>, %arg4: memref<1x128xi32, #tpu.memory_space<vmem>>, %arg5: memref<1x128xf32, #tpu.memory_space<vmem>>, %arg6: memref<1x128xf32, #tpu.memory_space<vmem>>) attributes {dimension_semantics = [#tpu.dimension_semantics<parallel>], iteration_bounds = array<i64: 1>, scalar_prefetch = 0 : i64, scratch_operands = 0 : i64, tpu.core_type = #tpu.core_type<tc>, window_params = [{transform_indices = @transform_0, window_bounds = array<i64: 1, 128>}, {pipeline_mode = #tpu.pipeline_mode<synchronous>, transform_indices = @transform_1, window_bounds = array<i64: 128, 1>}, {transform_indices = @transform_2, window_bounds = array<i64: 2, 128>}, {transform_indices = @transform_3, window_bounds = array<i64: 1, 128>}, {transform_indices = @transform_4, window_bounds = array<i64: 1, 128>}, {transform_indices = @transform_5, window_bounds = array<i64: 1, 128>}]} {
    %c0 = arith.constant 0 : index
    %c0_0 = arith.constant 0 : index
    %0 = vector.load %arg1[%c0, %c0_0] : memref<1x128xi32, #tpu.memory_space<vmem>>, vector<1x128xi32>
    %cst = arith.constant 1.000000e+00 : f32
    %1 = vector.broadcast %cst : f32 to vector<8x128xf32>
    %cst_1 = arith.constant 0.000000e+00 : f32
    %2 = vector.broadcast %cst_1 : f32 to vector<8x128xf32>
    %c0_i32 = arith.constant 0 : i32
    %c128_i32 = arith.constant 128 : i32
    %3 = arith.muli %c0_i32, %c128_i32 : i32
    %4 = tpu.assume_multiple %3, 128 : i32
    %5 = arith.index_cast %4 : i32 to index
    %c0_2 = arith.constant 0 : index
    %6 = vector.load %arg2[%5, %c0_2] : memref<128x1xi32, #tpu.memory_space<vmem>>, vector<128x1xi32>
    %7 = vector.broadcast %6 : vector<128x1xi32> to vector<128x128xi32>
    %8 = vector.broadcast %0 : vector<1x128xi32> to vector<128x128xi32>
    %9 = arith.cmpi eq, %7, %8 : vector<128x128xi32>
    %10 = arith.extui %9 : vector<128x128xi1> to vector<128x128xi32>
    %11 = arith.sitofp %10 : vector<128x128xi32> to vector<128x128xf32>
    %cst_3 = arith.constant dense<0.000000e+00> : vector<8x128xf32>
    %12 = tpu.matmul %1, %11, %cst_3 {dimension_numbers = #tpu.dot_dimension_numbers<[1], [0], [0], [1], [0, 0, 1, 1], [], []>} : vector<8x128xf32>, vector<128x128xf32>, vector<8x128xf32> -> vector<8x128xf32>
    %13 = arith.addf %2, %12 : vector<8x128xf32>
    %c1_i32 = arith.constant 1 : i32
    %14 = vector.extract_strided_slice %13 {offsets = [0, 0], sizes = [1, 128], strides = [1, 1]} : vector<8x128xf32> to vector<1x128xf32>
    %cst_4 = arith.constant 1.000000e+00 : f32
    %15 = vector.broadcast %cst_4 : f32 to vector<1x128xf32>
    %16 = arith.maximumf %14, %15 : vector<1x128xf32>
    %17 = math.rsqrt %16 : vector<1x128xf32>
    %c0_i32_5 = arith.constant 0 : i32
    %18 = vector.broadcast %c0_i32_5 : i32 to vector<1x128xi32>
    %19 = arith.cmpi sge, %0, %18 : vector<1x128xi32>
    %cst_6 = arith.constant 0.000000e+00 : f32
    %20 = vector.broadcast %cst_6 : f32 to vector<1x128xf32>
    %21 = arith.select %19, %17, %20 : vector<1x128xi1>, vector<1x128xf32>
    %c0_7 = arith.constant 0 : index
    %c0_8 = arith.constant 0 : index
    %22 = vector.load %arg3[%c0_7, %c0_8] : memref<2x128xf32, #tpu.memory_space<vmem>>, vector<2x128xf32>
    %cst_9 = arith.constant dense<0xFF800000> : vector<128xf32>
    %23 = vector.multi_reduction <maximumf>, %22, %cst_9 [0] : vector<2x128xf32> to vector<128xf32>
    %24 = vector.shape_cast %23 : vector<128xf32> to vector<1x128xf32>
    %25 = vector.broadcast %24 : vector<1x128xf32> to vector<2x128xf32>
    %26 = arith.subf %22, %25 : vector<2x128xf32>
    %27 = math.exp %26 : vector<2x128xf32>
    %cst_10 = arith.constant dense<0.000000e+00> : vector<128xf32>
    %28 = vector.multi_reduction <add>, %27, %cst_10 [0] : vector<2x128xf32> to vector<128xf32>
    %29 = vector.shape_cast %28 : vector<128xf32> to vector<1x128xf32>
    %30 = math.log %29 : vector<1x128xf32>
    %31 = arith.addf %24, %30 : vector<1x128xf32>
    %c0_11 = arith.constant 0 : index
    %c0_12 = arith.constant 0 : index
    %32 = vector.load %arg4[%c0_11, %c0_12] : memref<1x128xi32, #tpu.memory_space<vmem>>, vector<1x128xi32>
    %33 = tpu.iota {dimensions = array<i32: 0>} : vector<2x128xi32>
    %34 = vector.broadcast %32 : vector<1x128xi32> to vector<2x128xi32>
    %35 = arith.cmpi eq, %33, %34 : vector<2x128xi32>
    %cst_13 = arith.constant 0.000000e+00 : f32
    %36 = vector.broadcast %cst_13 : f32 to vector<2x128xf32>
    %37 = arith.select %35, %22, %36 : vector<2x128xi1>, vector<2x128xf32>
    %cst_14 = arith.constant dense<0.000000e+00> : vector<128xf32>
    %38 = vector.multi_reduction <add>, %37, %cst_14 [0] : vector<2x128xf32> to vector<128xf32>
    %39 = vector.shape_cast %38 : vector<128xf32> to vector<1x128xf32>
    %40 = arith.subf %31, %39 : vector<1x128xf32>
    %c0_15 = arith.constant 0 : index
    %c0_16 = arith.constant 0 : index
    %41 = vector.load %arg6[%c0_15, %c0_16] : memref<1x128xf32, #tpu.memory_space<vmem>>, vector<1x128xf32>
    tpu.vector_store %arg6[%c0_15, %c0_16], %21 {strides = array<i32>} : memref<1x128xf32, #tpu.memory_space<vmem>>, vector<1x128xf32>,
    %42 = arith.mulf %40, %21 : vector<1x128xf32>
    %c0_17 = arith.constant 0 : index
    %c0_18 = arith.constant 0 : index
    %43 = vector.load %arg5[%c0_17, %c0_18] : memref<1x128xf32, #tpu.memory_space<vmem>>, vector<1x128xf32>
    tpu.vector_store %arg5[%c0_17, %c0_18], %42 {strides = array<i32>} : memref<1x128xf32, #tpu.memory_space<vmem>>, vector<1x128xf32>,
    return
  }
  func.func @transform_0(%arg0: i32) -> (i32, i32) {
    %c0_i32 = arith.constant 0 : i32
    %c0_i32_0 = arith.constant 0 : i32
    return %c0_i32, %arg0 : i32, i32
  }
  func.func @transform_1(%arg0: i32) -> (i32, i32) {
    %c0_i32 = arith.constant 0 : i32
    %c0_i32_0 = arith.constant 0 : i32
    %c0_i32_1 = arith.constant 0 : i32
    return %c0_i32, %c0_i32_0 : i32, i32
  }
  func.func @transform_2(%arg0: i32) -> (i32, i32) {
    %c0_i32 = arith.constant 0 : i32
    %c0_i32_0 = arith.constant 0 : i32
    return %c0_i32, %arg0 : i32, i32
  }
  func.func @transform_3(%arg0: i32) -> (i32, i32) {
    %c0_i32 = arith.constant 0 : i32
    %c0_i32_0 = arith.constant 0 : i32
    return %c0_i32, %arg0 : i32, i32
  }
  func.func @transform_4(%arg0: i32) -> (i32, i32) {
    %c0_i32 = arith.constant 0 : i32
    %c0_i32_0 = arith.constant 0 : i32
    return %c0_i32, %arg0 : i32, i32
  }
  func.func @transform_5(%arg0: i32) -> (i32, i32) {
    %c0_i32 = arith.constant 0 : i32
    %c0_i32_0 = arith.constant 0 : i32
    return %c0_i32, %arg0 : i32, i32
  }
}

</mosaic_0001>

<llo_original>
// kernel: tpu_custom_call.1
$region0: #{tpu_custom_call.1}
  #allocation0 [shape = 'u32[]', space=smem, size = 0x4, offset = 0x4, fixed_abs, tag = 'smem constant byte address 0x4 - core index']
  #allocation1 [shape = 'u32[144,128]{1,0:T(1,128)}', space=vmem, size = 0x12000, scoped, tag = 'internal scratch']
  %s0 = inlined_call_operand.vmem [shape: s32[1,128], index: 0, kind: input, shape index: {}]
  %s1 = inlined_call_operand.vmem [shape: s32[128,1], index: 1, kind: input, shape index: {}]
  %s2 = inlined_call_operand.vmem [shape: f32[2,128], index: 2, kind: input, shape index: {}]
  %s3 = inlined_call_operand.vmem [shape: s32[1,128], index: 3, kind: input, shape index: {}]
  %s4 = inlined_call_operand.hbm [shape: f32[1,128], index: 4, kind: output, shape index: {0}]
  %s5 = inlined_call_operand.hbm [shape: f32[1,128], index: 5, kind: output, shape index: {1}]
  %6 = xla_tuple %s4, %s5
  %s7 = sld [smem:[#allocation0]]
  $region34: #{tpu_custom_call.1} parent=0
    _
  %s9 = ssub.s32 1, %s7
  %s10 = scalar_select 0, %s9, %s7
  $region1: #{tpu_custom_call.1} parent=0
    #allocation2 [shape = 'u8[512]{0}', space=vmem, size = 0x400, scoped, tag = 'output window, operand 0, single buffered']
    #allocation3 [shape = 's32[1]{0}', space=sflag, size = 0x4, scoped, tag = 'scoped memory for tpu_custom_call.1']
    #allocation4 [shape = 'u8[512]{0}', space=vmem, size = 0x400, scoped, tag = 'output window, operand 1, single buffered']
    #allocation5 [shape = 's32[1]{0}', space=sflag, size = 0x4, scoped, tag = 'scoped memory for tpu_custom_call.1']
    %11 = vsyncpa [#allocation3], 0
    %12 = vsyncpa [#allocation5], 0
    // Predicated region
    $region2: #{tpu_custom_call.1} parent=1 // pred_check
      _
    $region3: #{tpu_custom_call.1} parent=1 // pred_check_branch
      %14 = sbr.rel (0) target = $region5
    $region4: #{tpu_custom_call.1} parent=1 // pred_region
      _
    $region5: #{tpu_custom_call.1} parent=1 // pred_fallthru
      _
    // Predicated region
    $region6: #{tpu_custom_call.1} parent=1 // pred_check
      _
    $region7: #{tpu_custom_call.1} parent=1 // pred_check_branch
      %16 = sbr.rel (0) target = $region9
    $region8: #{tpu_custom_call.1} parent=1 // pred_region
      _
    $region9: #{tpu_custom_call.1} parent=1 // pred_fallthru
      _
    // Predicated region
    $region10: #{tpu_custom_call.1} parent=1 // pred_check
      _
    $region11: #{tpu_custom_call.1} parent=1 // pred_check_branch
      %18 = sbr.rel (0) target = $region13
    $region12: #{tpu_custom_call.1} parent=1 // pred_region
      _
    $region13: #{tpu_custom_call.1} parent=1 // pred_fallthru
      _
    // Predicated region
    $region14: #{tpu_custom_call.1} parent=1 // pred_check
      _
    $region15: #{tpu_custom_call.1} parent=1 // pred_check_branch
      %20 = sbr.rel (0) target = $region17
    $region16: #{tpu_custom_call.1} parent=1 // pred_region
      _
    $region17: #{tpu_custom_call.1} parent=1 // pred_fallthru
      _
    %v21 = vld [vmem:[%s0] sm:$0x1]
    %v22 = vld [vmem:[%s1] sm:$0xff]
    %v23 = vld [vmem:[%s1 + $0x8] sm:$0xff]
    %v24 = vld [vmem:[%s1 + $0x10] sm:$0xff]
    %v25 = vld [vmem:[%s1 + $0x18] sm:$0xff]
    %v26 = vld [vmem:[%s1 + $0x20] sm:$0xff]
    %v27 = vld [vmem:[%s1 + $0x28] sm:$0xff]
    %v28 = vld [vmem:[%s1 + $0x30] sm:$0xff]
    %v29 = vld [vmem:[%s1 + $0x38] sm:$0xff]
    %v30 = vld [vmem:[%s1 + $0x40] sm:$0xff]
    %v31 = vld [vmem:[%s1 + $0x48] sm:$0xff]
    %v32 = vld [vmem:[%s1 + $0x50] sm:$0xff]
    %v33 = vld [vmem:[%s1 + $0x58] sm:$0xff]
    %v34 = vld [vmem:[%s1 + $0x60] sm:$0xff]
    %v35 = vld [vmem:[%s1 + $0x68] sm:$0xff]
    %v36 = vld [vmem:[%s1 + $0x70] sm:$0xff]
    %v37 = vld [vmem:[%s1 + $0x78] sm:$0xff]
    %38 = vset.pattern.permute.xlu0 0
    %39 = vperm.xlu0 %38, %v22
    %v40 = vpop.permute.xlu0 %39
    %41 = vset.pattern.permute.xlu0 0
    %42 = vperm.xlu0 %41, %v23
    %v43 = vpop.permute.xlu0 %42
    %44 = vset.pattern.permute.xlu0 0
    %45 = vperm.xlu0 %44, %v24
    %v46 = vpop.permute.xlu0 %45
    %47 = vset.pattern.permute.xlu0 0
    %48 = vperm.xlu0 %47, %v25
    %v49 = vpop.permute.xlu0 %48
    %50 = vset.pattern.permute.xlu0 0
    %51 = vperm.xlu0 %50, %v26
    %v52 = vpop.permute.xlu0 %51
    %53 = vset.pattern.permute.xlu0 0
    %54 = vperm.xlu0 %53, %v27
    %v55 = vpop.permute.xlu0 %54
    %56 = vset.pattern.permute.xlu0 0
    %57 = vperm.xlu0 %56, %v28
    %v58 = vpop.permute.xlu0 %57
    %59 = vset.pattern.permute.xlu0 0
    %60 = vperm.xlu0 %59, %v29
    %v61 = vpop.permute.xlu0 %60
    %62 = vset.pattern.permute.xlu0 0
    %63 = vperm.xlu0 %62, %v30
    %v64 = vpop.permute.xlu0 %63
    %65 = vset.pattern.permute.xlu0 0
    %66 = vperm.xlu0 %65, %v31
    %v67 = vpop.permute.xlu0 %66
    %68 = vset.pattern.permute.xlu0 0
    %69 = vperm.xlu0 %68, %v32
    %v70 = vpop.permute.xlu0 %69
    %71 = vset.pattern.permute.xlu0 0
    %72 = vperm.xlu0 %71, %v33
    %v73 = vpop.permute.xlu0 %72
    %74 = vset.pattern.permute.xlu0 0
    %75 = vperm.xlu0 %74, %v34
    %v76 = vpop.permute.xlu0 %75
    %77 = vset.pattern.permute.xlu0 0
    %78 = vperm.xlu0 %77, %v35
    %v79 = vpop.permute.xlu0 %78
    %80 = vset.pattern.permute.xlu0 0
    %81 = vperm.xlu0 %80, %v36
    %v82 = vpop.permute.xlu0 %81
    %83 = vset.pattern.permute.xlu0 0
    %84 = vperm.xlu0 %83, %v37
    %v85 = vpop.permute.xlu0 %84
    %v86 = vlaneseq
    %v87 = vshrl.u32 %v86, 7
    %v88 = vsub.s32 0, %v87
    %v89 = vrot.slane %v21, %v88
    %vm90 = vcmp.eq.s32.totalorder %v40, %v89
    %vm91 = vcmp.eq.s32.totalorder %v43, %v89
    %vm92 = vcmp.eq.s32.totalorder %v46, %v89
    %vm93 = vcmp.eq.s32.totalorder %v49, %v89
    %vm94 = vcmp.eq.s32.totalorder %v52, %v89
    %vm95 = vcmp.eq.s32.totalorder %v55, %v89
    %vm96 = vcmp.eq.s32.totalorder %v58, %v89
    %vm97 = vcmp.eq.s32.totalorder %v61, %v89
    %vm98 = vcmp.eq.s32.totalorder %v64, %v89
    %vm99 = vcmp.eq.s32.totalorder %v67, %v89
    %vm100 = vcmp.eq.s32.totalorder %v70, %v89
    %vm101 = vcmp.eq.s32.totalorder %v73, %v89
    %vm102 = vcmp.eq.s32.totalorder %v76, %v89
    %vm103 = vcmp.eq.s32.totalorder %v79, %v89
    %vm104 = vcmp.eq.s32.totalorder %v82, %v89
    %vm105 = vcmp.eq.s32.totalorder %v85, %v89
    %v106 = vsel %vm90, 1, 0
    %v107 = vsel %vm91, 1, 0
    %v108 = vsel %vm92, 1, 0
    %v109 = vsel %vm93, 1, 0
    %v110 = vsel %vm94, 1, 0
    %v111 = vsel %vm95, 1, 0
    %v112 = vsel %vm96, 1, 0
    %v113 = vsel %vm97, 1, 0
    %v114 = vsel %vm98, 1, 0
    %v115 = vsel %vm99, 1, 0
    %v116 = vsel %vm100, 1, 0
    %v117 = vsel %vm101, 1, 0
    %v118 = vsel %vm102, 1, 0
    %v119 = vsel %vm103, 1, 0
    %v120 = vsel %vm104, 1, 0
    %v121 = vsel %vm105, 1, 0
    %v122 = vcvt.s32.f32 %v106
    %v123 = vcvt.s32.f32 %v107
    %v124 = vcvt.s32.f32 %v108
    %v125 = vcvt.s32.f32 %v109
    %v126 = vcvt.s32.f32 %v110
    %v127 = vcvt.s32.f32 %v111
    %v128 = vcvt.s32.f32 %v112
    %v129 = vcvt.s32.f32 %v113
    %v130 = vcvt.s32.f32 %v114
    %v131 = vcvt.s32.f32 %v115
    %v132 = vcvt.s32.f32 %v116
    %v133 = vcvt.s32.f32 %v117
    %v134 = vcvt.s32.f32 %v118
    %v135 = vcvt.s32.f32 %v119
    %v136 = vcvt.s32.f32 %v120
    %v137 = vcvt.s32.f32 %v121
    %138 = vmatprep.subr.mxu0 0.0
    %139 = vmatpush1.msra.mxu0 %v122
    %140 = vmatprep.subr.mxu0 0.0
    %141 = vmatpush1.msra.mxu0 %v123
    %142 = vmatprep.subr.mxu0 0.0
    %143 = vmatpush1.msra.mxu0 %v124
    %144 = vmatprep.subr.mxu0 0.0
    %145 = vmatpush1.msra.mxu0 %v125
    %146 = vmatprep.subr.mxu0 0.0
    %147 = vmatpush1.msra.mxu0 %v126
    %148 = vmatprep.subr.mxu0 0.0
    %149 = vmatpush1.msra.mxu0 %v127
    %150 = vmatprep.subr.mxu0 0.0
    %151 = vmatpush1.msra.mxu0 %v128
    %152 = vmatprep.subr.mxu0 0.0
    %153 = vmatpush1.msra.mxu0 %v129
    %154 = vmatprep.subr.mxu0 0.0
    %155 = vmatpush1.msra.mxu0 %v130
    %156 = vmatprep.subr.mxu0 0.0
    %157 = vmatpush1.msra.mxu0 %v131
    %158 = vmatprep.subr.mxu0 0.0
    %159 = vmatpush1.msra.mxu0 %v132
    %160 = vmatprep.subr.mxu0 0.0
    %161 = vmatpush1.msra.mxu0 %v133
    %162 = vmatprep.subr.mxu0 0.0
    %163 = vmatpush1.msra.mxu0 %v134
    %164 = vmatprep.subr.mxu0 0.0
    %165 = vmatpush1.msra.mxu0 %v135
    %166 = vmatprep.subr.mxu0 0.0
    %167 = vmatpush1.msra.mxu0 %v136
    %168 = vmatprep.subr.mxu0 0.0
    %169 = vmatpush1.msra.mxu0 %v137
    %170 = vmatprep.subr.mxu0 0.0
    %171 = vmatpush1.msra.mxu0 0.0
    %172 = vmatprep.subr.mxu0 0.0
    %173 = vmatpush1.msra.mxu0 0.0
    %174 = vmatprep.subr.mxu0 0.0
    %175 = vmatpush1.msra.mxu0 0.0
    %176 = vmatprep.subr.mxu0 0.0
    %177 = vmatpush1.msra.mxu0 0.0
    %178 = vmatprep.subr.mxu0 0.0
    %179 = vmatpush1.msra.mxu0 0.0
    %180 = vmatprep.subr.mxu0 0.0
    %181 = vmatpush1.msra.mxu0 0.0
    %182 = vmatprep.subr.mxu0 0.0
    %183 = vmatpush1.msra.mxu0 0.0
    %184 = vmatprep.subr.mxu0 0.0
    %185 = vmatpush1.msra.mxu0 0.0
    %186 = vmatprep.subr.mxu0 0.0
    %187 = vmatpush1.msra.mxu0 0.0
    %188 = vmatprep.subr.mxu0 0.0
    %189 = vmatpush1.msra.mxu0 0.0
    %190 = vmatprep.subr.mxu0 0.0
    %191 = vmatpush1.msra.mxu0 0.0
    %192 = vmatprep.subr.mxu0 0.0
    %193 = vmatpush1.msra.mxu0 0.0
    %194 = vmatprep.subr.mxu0 0.0
    %195 = vmatpush1.msra.mxu0 0.0
    %196 = vmatprep.subr.mxu0 0.0
    %197 = vmatpush1.msra.mxu0 0.0
    %198 = vmatprep.subr.mxu0 0.0
    %199 = vmatpush1.msra.mxu0 0.0
    %200 = vmatprep.subr.mxu0 0.0
    %201 = vmatpush1.msra.mxu0 0.0
    %202 = vmatprep.mubr.f32.mxu0 0.0
    %203 = vmatmul.mubr.f32.gmra.mrb[0].mxu0 1.0
    %v204 = vpop.f32.mrb[0].mxu0
    %v205 = vadd.f32 0.0, %v204
    %v206 = vpop.f32.mrb[0].mxu0
    %207 = vdwg.mxu0
    %v208 = vmax.f32 %v205, 1.0
    %v209 = vrsqrt.pop %v208
    %vm210 = vcmp.ge.s32.totalorder %v21, 0
    %v211 = vsel %vm210, %v209, 0.0
    %v212 = vld [vmem:[%s2] sm:$0x3]
    %vm213 = vcmask 1041408
    %v214 = vsel %vm213, %v212, -inf
    %v215 = vrot.slane %v214, 4
    %v216 = vmax.f32 %v214, %v215
    %v217 = vrot.slane %v216, 2
    %v218 = vmax.f32 %v216, %v217
    %v219 = vrot.slane %v218, 1
    %v220 = vmax.f32 %v218, %v219
    %v221 = vsub.f32 %v212, %v220
    %v222 = vmul.f32 %v221, 1.442695
    %v223 = vpow.pop %v222
    %v224 = vsel %vm213, %v223, 0.0
    %v225 = vrot.slane %v224, 4
    %v226 = vadd.f32 %v224, %v225
    %v227 = vrot.slane %v226, 2
    %v228 = vadd.f32 %v226, %v227
    %v229 = vrot.slane %v228, 1
    %v230 = vadd.f32 %v228, %v229
    %v231 = vlog2.pop %v230
    %v232 = vmul.f32 %v231, 0.6931472
    %v233 = vadd.f32 %v220, %v232
    %v234 = vld [vmem:[%s3] sm:$0x1]
    %v235 = vlaneseq
    %v236 = vshrl.u32 %v235, 7
    %v237 = vlaneseq
    %v238 = vshrl.u32 %v237, 7
    %v239 = vsub.s32 0, %v238
    %v240 = vrot.slane %v234, %v239
    %vm241 = vcmp.eq.s32.totalorder %v236, %v240
    %v242 = vsel %vm241, %v212, 0.0
    %v243 = vsel %vm213, %v242, 0.0
    %v244 = vrot.slane %v243, 4
    %v245 = vadd.f32 %v243, %v244
    %v246 = vrot.slane %v245, 2
    %v247 = vadd.f32 %v245, %v246
    %v248 = vrot.slane %v247, 1
    %v249 = vadd.f32 %v247, %v248
    %v250 = vsub.f32 %v233, %v249
    %251 = vst [vmem:[#allocation4] sm:$0x1] %v211
    %v252 = vmul.f32 %v250, %v211
    %253 = vst [vmem:[#allocation2] sm:$0x1] %v252
    // Predicated region
    $region18: #{tpu_custom_call.1} parent=1 // pred_check
      _
    $region19: #{tpu_custom_call.1} parent=1 // pred_check_branch
      %255 = sbr.rel (0) target = $region21
    $region20: #{tpu_custom_call.1} parent=1 // pred_region
      %s257 = ssub.s32 16, 16
      %258 = vsyncadd [#allocation3], %s257
      %s260 = sshll.u32 [#allocation2], 4
      %s261 = int_to_ptr.vmem [resolvable:$true] %s260
      %263 = dma.vmem_to_hbm [thread:$0]  %s261, 16, %s4, [#allocation3]
    $region21: #{tpu_custom_call.1} parent=1 // pred_fallthru
      _
    // Predicated region
    $region22: #{tpu_custom_call.1} parent=1 // pred_check
      _
    $region23: #{tpu_custom_call.1} parent=1 // pred_check_branch
      %265 = sbr.rel (0) target = $region25
    $region24: #{tpu_custom_call.1} parent=1 // pred_region
      %s267 = ssub.s32 16, 16
      %268 = vsyncadd [#allocation5], %s267
      %s270 = sshll.u32 [#allocation4], 4
      %s271 = int_to_ptr.vmem [resolvable:$true] %s270
      %273 = dma.vmem_to_hbm [thread:$0]  %s271, 16, %s5, [#allocation5]
    $region25: #{tpu_custom_call.1} parent=1 // pred_fallthru
      _
    // Predicated region
    $region26: #{tpu_custom_call.1} parent=1 // pred_check
      _
    $region27: #{tpu_custom_call.1} parent=1 // pred_check_branch
      %275 = sbr.rel (0) target = $region29
    $region28: #{tpu_custom_call.1} parent=1 // pred_region
      %276 = dma.done [#allocation3], 16
    $region29: #{tpu_custom_call.1} parent=1 // pred_fallthru
      _
    // Predicated region
    $region30: #{tpu_custom_call.1} parent=1 // pred_check
      _
    $region31: #{tpu_custom_call.1} parent=1 // pred_check_branch
      %278 = sbr.rel (0) target = $region33
    $region32: #{tpu_custom_call.1} parent=1 // pred_region
      %279 = dma.done [#allocation5], 16
    $region33: #{tpu_custom_call.1} parent=1 // pred_fallthru
      _
    %280 = vsyncpa [#allocation3], 1
    %281 = vsyncpa [#allocation5], 1

</llo_original>
